<compile_context>
chip_gen: v7x
topology: tpu7x:2x2x1
jax: 0.10.0
libtpu: 0.0.40
codegen_flags: <defaults>
</compile_context>

<pallas_src>
import functools

import jax
import jax.numpy as jnp
from jax.experimental import pallas as pl
from jax.experimental.pallas import tpu as pltpu


def _round_up(x, m):
    return ((x + m - 1) // m) * m


def _pick_tile(dim, align, cap):
    """Largest tile <= cap that avoids padding when possible.

    Preference order:
      1. `dim` itself if dim <= cap (a full-extent block is always layout-legal,
         even when unaligned),
      2. the largest multiple of `align` <= cap that divides `dim` (no padding),
      3. `cap` (caller pads `dim` up to a multiple of cap — rare fallback).
    """
    cap = max(align, (cap // align) * align)
    if dim <= cap:
        return dim
    t = cap
    while t >= align:
        if dim % t == 0:
            return t
        t -= align
    return cap


def _largest_divisor_leq(n, cap):
    cap = max(1, min(n, cap))
    for d in range(cap, 0, -1):
        if n % d == 0:
            return d
    return 1


def _vmem_capacity_bytes():
    try:
        return int(pltpu.get_tpu_info().vmem_capacity_bytes)
    except Exception:
        return 64 * 1024 * 1024  # conservative (v7x-sized) fallback


# ---------------------------------------------------------------------------
# Kernels.
#   *_acc      : K spans multiple tiles -> resident f32 VMEM accumulator,
#                init at k==0, cast+store at k==last.
#   *_noacc    : whole K fits in one tile -> write the dot straight to o_ref.
#   batched_*  : batch dim kept in the block (bb batches per grid step) and
#                contracted with a batched einsum — used when M or N < 128.
# ---------------------------------------------------------------------------
def _bmm_kernel_acc(a_ref, b_ref, o_ref, acc_ref, *, precision):
    @pl.when(pl.program_id(3) == 0)
    def _():
        acc_ref[...] = jnp.zeros_like(acc_ref)

    acc_ref[...] += jnp.dot(
        a_ref[...], b_ref[...],
        preferred_element_type=jnp.float32, precision=precision)

    @pl.when(pl.program_id(3) == pl.num_programs(3) - 1)
    def _():
        o_ref[...] = acc_ref[...].astype(o_ref.dtype)


def _bmm_kernel_noacc(a_ref, b_ref, o_ref, *, precision):
    o_ref[...] = jnp.dot(
        a_ref[...], b_ref[...],
        preferred_element_type=jnp.float32, precision=precision
    ).astype(o_ref.dtype)


def _bmm_kernel_batched_acc(a_ref, b_ref, o_ref, acc_ref, *, precision):
    @pl.when(pl.program_id(3) == 0)
    def _():
        acc_ref[...] = jnp.zeros_like(acc_ref)

    acc_ref[...] += jnp.einsum(
        "bmk,bkn->bmn", a_ref[...], b_ref[...],
        preferred_element_type=jnp.float32, precision=precision)

    @pl.when(pl.program_id(3) == pl.num_programs(3) - 1)
    def _():
        o_ref[...] = acc_ref[...].astype(o_ref.dtype)


def _bmm_kernel_batched_noacc(a_ref, b_ref, o_ref, *, precision):
    o_ref[...] = jnp.einsum(
        "bmk,bkn->bmn", a_ref[...], b_ref[...],
        preferred_element_type=jnp.float32, precision=precision
    ).astype(o_ref.dtype)


def bmm_rrr(a, b, *, precision=None):
    """torch.bmm semantics: a (B,M,K) @ b (B,K,N) -> (B,M,N), both row-major."""
    B, M, K = a.shape
    Bb, Kb, N = b.shape
    assert B == Bb, f"batch mismatch: {B} vs {Bb}"
    assert K == Kb, f"K mismatch: {K} vs {Kb}"
    out_dtype = jnp.result_type(a.dtype, b.dtype)

    a_it = jnp.dtype(a.dtype).itemsize
    b_it = jnp.dtype(b.dtype).itemsize
    o_it = jnp.dtype(out_dtype).itemsize

    if precision is None:
        # torch.bmm accumulates f32 inputs in true float32; match it on the MXU.
        # bf16 / narrow inputs keep the fast default MXU path.
        if a.dtype == jnp.float32 or b.dtype == jnp.float32:
            precision = jax.lax.Precision.HIGHEST
        else:
            precision = jax.lax.Precision.DEFAULT

    # ---- per-generation tile caps -----------------------------------------
    vmem_cap = _vmem_capacity_bytes()
    big_vmem = vmem_cap >= 96 * 1024 * 1024        # v5e / v6e: 128 MiB VMEM
    narrow = a_it <= 2 and b_it <= 2               # bf16 / fp8 operands
    if big_vmem:
        mn_cap = 1024 if narrow else 512           # bigger tiles clear the HBM knee
        vmem_limit_max = 64 * 1024 * 1024
    else:                                          # v7x: 64 MiB physical VMEM
        mn_cap = 512                               # already compute-bound at 512
        vmem_limit_max = 40 * 1024 * 1024
    k_cap = 1024                                   # amortize acc RMW / step overhead

    small = (M < 128) or (N < 128)

    if small:
        # Tiny per-batch GEMMs: keep M/N/K whole when possible and block the
        # batch dim so per-grid-step overhead and MXU fill are amortized.
        tm = _pick_tile(M, 8, 512)
        tn = _pick_tile(N, 128, mn_cap)
        tk = _pick_tile(K, 128, k_cap)
        per_b = 2 * (tm * tk * a_it + tk * tn * b_it + tm * tn * o_it) + tm * tn * 4
        bb = _largest_divisor_leq(
            B, min(16, max(1, (24 * 1024 * 1024) // max(per_b, 1))))
    else:
        tm = _pick_tile(M, 8, mn_cap)
        tn = _pick_tile(N, 128, mn_cap)
        tk = _pick_tile(K, 128, k_cap)
        bb = 1

    # Pad only when a dim has no usable whole tile (zero-fill is exact for
    # matmul). Common benchmark shapes take the zero-copy path.
    Mp, Np, Kp = _round_up(M, tm), _round_up(N, tn), _round_up(K, tk)
    if (Mp, Kp) != (M, K):
        a = jnp.pad(a, ((0, 0), (0, Mp - M), (0, Kp - K)))
    if (Kp, Np) != (K, N):
        b = jnp.pad(b, ((0, 0), (0, Kp - K), (0, Np - N)))

    m_tiles, n_tiles, k_tiles = Mp // tm, Np // tn, Kp // tk
    grid = (B // bb, m_tiles, n_tiles, k_tiles)
    use_acc = k_tiles > 1

    if small:
        a_spec = pl.BlockSpec((bb, tm, tk), lambda bi, i, j, k: (bi, i, k))
        b_spec = pl.BlockSpec((bb, tk, tn), lambda bi, i, j, k: (bi, k, j))
        o_spec = pl.BlockSpec((bb, tm, tn), lambda bi, i, j, k: (bi, i, j))
        scratch = [pltpu.VMEM((bb, tm, tn), jnp.float32)] if use_acc else []
        kernel = _bmm_kernel_batched_acc if use_acc else _bmm_kernel_batched_noacc
    else:
        a_spec = pl.BlockSpec((pl.Squeezed(), tm, tk), lambda bi, i, j, k: (bi, i, k))
        b_spec = pl.BlockSpec((pl.Squeezed(), tk, tn), lambda bi, i, j, k: (bi, k, j))
        o_spec = pl.BlockSpec((pl.Squeezed(), tm, tn), lambda bi, i, j, k: (bi, i, j))
        scratch = [pltpu.VMEM((tm, tn), jnp.float32)] if use_acc else []
        kernel = _bmm_kernel_acc if use_acc else _bmm_kernel_noacc

    # Double-buffered a/b/out tiles (+ resident f32 accumulator) + slack.
    tile_bytes = 2 * bb * (tm * tk * a_it + tk * tn * b_it + tm * tn * o_it)
    if use_acc:
        tile_bytes += bb * tm * tn * 4
    vmem_limit = int(min(vmem_limit_max, max(32 * 1024 * 1024, 2 * tile_bytes)))

    # Streamed traffic: A is re-read once per N tile, B once per M tile.
    cost = pl.CostEstimate(
        flops=2 * B * M * N * K,
        transcendentals=0,
        bytes_accessed=int(B * M * K * a_it * n_tiles
                           + B * K * N * b_it * m_tiles
                           + B * M * N * o_it),
    )

    out_padded = pl.pallas_call(
        functools.partial(kernel, precision=precision),
        out_shape=jax.ShapeDtypeStruct((B, Mp, Np), out_dtype),
        grid_spec=pltpu.PrefetchScalarGridSpec(
            num_scalar_prefetch=0,
            grid=grid,
            in_specs=[a_spec, b_spec],
            out_specs=o_spec,
            scratch_shapes=scratch,
        ),
        compiler_params=pltpu.CompilerParams(
            # batch / M / N parallel (megacore & v7x dual-TC sharding),
            # K innermost reduction axis.
            dimension_semantics=("parallel", "parallel", "parallel", "arbitrary"),
            vmem_limit_bytes=vmem_limit,
        ),
        cost_estimate=cost,
    )(a, b)

    if (Mp, Np) != (M, N):
        out_padded = out_padded[:, :M, :N]
    return out_padded


if __name__ == "__main__":
    key = jax.random.PRNGKey(0)
    ka, kb, kc, kd, ke, kf = jax.random.split(key, 6)
    hp = jax.lax.Precision.HIGHEST

    # 1) torch.bmm-style small case: batch=2, M=8, K=32, N=16 (batch-blocked path).
    B, M, K, N = 2, 8, 32, 16
    a = jax.random.normal(ka, (B, M, K), dtype=jnp.float32)
    b = jax.random.normal(kb, (B, K, N), dtype=jnp.float32)
    out = bmm_rrr(a, b)
    jax.block_until_ready(out)
    ref = jnp.matmul(a, b, precision=hp)
    assert out.shape == (B, M, N)
    assert jnp.allclose(out, ref, atol=1e-4, rtol=1e-4), "mismatch vs reference (1)"

    # 2) Non-tile-divisible dims: full-extent blocks, no pad/slice copies.
    B2, M2, K2, N2 = 2, 20, 130, 200
    a2 = jax.random.normal(kc, (B2, M2, K2), dtype=jnp.float32)
    b2 = jax.random.normal(kd, (B2, K2, N2), dtype=jnp.float32)
    out2 = bmm_rrr(a2, b2)
    jax.block_until_ready(out2)
    ref2 = jnp.matmul(a2, b2, precision=hp)
    assert out2.shape == (B2, M2, N2)
    assert jnp.allclose(out2, ref2, atol=1e-3, rtol=1e-4), "mismatch vs reference (2)"

    # 3) Tiled path with a multi-tile K reduction (f32 VMEM accumulator).
    B3, M3, K3, N3 = 2, 128, 2048, 256
    a3 = jax.random.normal(ke, (B3, M3, K3), dtype=jnp.float32)
    b3 = jax.random.normal(kf, (B3, K3, N3), dtype=jnp.float32)
    out3 = bmm_rrr(a3, b3)
    jax.block_until_ready(out3)
    ref3 = jnp.matmul(a3, b3, precision=hp)
    assert out3.shape == (B3, M3, N3)
    assert jnp.allclose(out3, ref3, atol=5e-3, rtol=1e-3), "mismatch vs reference (3)"

    print("KERNEL_OK")
</pallas_src>

<mosaic_0001>
module attributes {stable_mosaic.version = 11 : i64} {
  func.func @_bmm_kernel_batched_noacc(%arg0: i32, %arg1: i32, %arg2: i32, %arg3: i32, %arg4: memref<2x8x32xf32, #tpu.memory_space<vmem>>, %arg5: memref<2x32x16xf32, #tpu.memory_space<vmem>>, %arg6: memref<2x8x16xf32, #tpu.memory_space<vmem>>) attributes {dimension_semantics = [#tpu.dimension_semantics<parallel>, #tpu.dimension_semantics<parallel>, #tpu.dimension_semantics<parallel>, #tpu.dimension_semantics<arbitrary>], iteration_bounds = array<i64: 1, 1, 1, 1>, scalar_prefetch = 0 : i64, scratch_operands = 0 : i64, tpu.core_type = #tpu.core_type<tc>, window_params = [{transform_indices = @transform_0, window_bounds = array<i64: 2, 8, 32>}, {transform_indices = @transform_1, window_bounds = array<i64: 2, 32, 16>}, {transform_indices = @transform_2, window_bounds = array<i64: 2, 8, 16>}]} {
    %c0 = arith.constant 0 : index
    %c0_0 = arith.constant 0 : index
    %c0_1 = arith.constant 0 : index
    %0 = vector.load %arg4[%c0, %c0_0, %c0_1] : memref<2x8x32xf32, #tpu.memory_space<vmem>>, vector<2x8x32xf32>
    %c0_2 = arith.constant 0 : index
    %c0_3 = arith.constant 0 : index
    %c0_4 = arith.constant 0 : index
    %1 = vector.load %arg5[%c0_2, %c0_3, %c0_4] : memref<2x32x16xf32, #tpu.memory_space<vmem>>, vector<2x32x16xf32>
    "tpu.trace_start"() <{level = 10 : i32, message = "bmk,bkn->bmn"}> : () -> ()
    %cst = arith.constant dense<0.000000e+00> : vector<2x8x16xf32>
    %2 = tpu.matmul %0, %1, %cst {dimension_numbers = #tpu.dot_dimension_numbers<[2], [1], [1], [2], [0, 0, 0, 1, 1, 2], [0], [0]>, precision = #tpu.contract_precision<fp32>} : vector<2x8x32xf32>, vector<2x32x16xf32>, vector<2x8x16xf32> -> vector<2x8x16xf32>
    "tpu.trace_stop"() : () -> ()
    %c0_5 = arith.constant 0 : index
    %c0_6 = arith.constant 0 : index
    %c0_7 = arith.constant 0 : index
    %3 = vector.load %arg6[%c0_5, %c0_6, %c0_7] : memref<2x8x16xf32, #tpu.memory_space<vmem>>, vector<2x8x16xf32>
    tpu.vector_store %arg6[%c0_5, %c0_6, %c0_7], %2 {strides = array<i32>} : memref<2x8x16xf32, #tpu.memory_space<vmem>>, vector<2x8x16xf32>,
    return
  }
  func.func @transform_0(%arg0: i32, %arg1: i32, %arg2: i32, %arg3: i32) -> (i32, i32, i32) {
    %c0_i32 = arith.constant 0 : i32
    return %arg0, %arg1, %arg3 : i32, i32, i32
  }
  func.func @transform_1(%arg0: i32, %arg1: i32, %arg2: i32, %arg3: i32) -> (i32, i32, i32) {
    %c0_i32 = arith.constant 0 : i32
    return %arg0, %arg3, %arg2 : i32, i32, i32
  }
  func.func @transform_2(%arg0: i32, %arg1: i32, %arg2: i32, %arg3: i32) -> (i32, i32, i32) {
    %c0_i32 = arith.constant 0 : i32
    return %arg0, %arg1, %arg2 : i32, i32, i32
  }
}

</mosaic_0001>

<llo_original>
// kernel: tpu_custom_call.1
$region0: #{tpu_custom_call.1}
  #allocation0 [shape = 'u32[]', space=smem, size = 0x4, offset = 0x4, fixed_abs, tag = 'smem constant byte address 0x4 - core index']
  #allocation1 [shape = 'u32[144,128]{1,0:T(1,128)}', space=vmem, size = 0x12000, scoped, tag = 'internal scratch']
  %s0 = inlined_call_operand.vmem [shape: f32[2,8,32], index: 0, kind: input, shape index: {}]
  %s1 = inlined_call_operand.vmem [shape: f32[2,32,16], index: 1, kind: input, shape index: {}]
  %s2 = inlined_call_operand.hbm [shape: f32[2,8,16], index: 2, kind: output, shape index: {}]
  %s3 = sld [smem:[#allocation0]]
  $region18: #{tpu_custom_call.1} parent=0
    _
  %s5 = ssub.s32 1, %s3
  %s6 = scalar_select 0, %s5, %s3
  $region1: #{tpu_custom_call.1} parent=0
    #allocation2 [shape = 'u8[8192]{0}', space=vmem, size = 0x2000, scoped, tag = 'output window, operand 0, single buffered']
    #allocation3 [shape = 's32[1]{0}', space=sflag, size = 0x4, scoped, tag = 'scoped memory for tpu_custom_call.1']
    %7 = vsyncpa [#allocation3], 0
    // Predicated region
    $region2: #{tpu_custom_call.1} parent=1 // pred_check
      _
    $region3: #{tpu_custom_call.1} parent=1 // pred_check_branch
      %9 = sbr.rel (0) target = $region5
    $region4: #{tpu_custom_call.1} parent=1 // pred_region
      _
    $region5: #{tpu_custom_call.1} parent=1 // pred_fallthru
      _
    // Predicated region
    $region6: #{tpu_custom_call.1} parent=1 // pred_check
      _
    $region7: #{tpu_custom_call.1} parent=1 // pred_check_branch
      %11 = sbr.rel (0) target = $region9
    $region8: #{tpu_custom_call.1} parent=1 // pred_region
      _
    $region9: #{tpu_custom_call.1} parent=1 // pred_fallthru
      _
    %v12 = vld [vmem:[%s0] sm:$0xff]
    %v13 = vld [vmem:[%s0 + $0x8] sm:$0xff]
    %v14 = vld [vmem:[%s1] sm:$0xff]
    %v15 = vld [vmem:[%s1 + $0x8] sm:$0xff]
    %v16 = vld [vmem:[%s1 + $0x10] sm:$0xff]
    %v17 = vld [vmem:[%s1 + $0x18] sm:$0xff]
    %v18 = vld [vmem:[%s1 + $0x20] sm:$0xff]
    %v19 = vld [vmem:[%s1 + $0x28] sm:$0xff]
    %v20 = vld [vmem:[%s1 + $0x30] sm:$0xff]
    %v21 = vld [vmem:[%s1 + $0x38] sm:$0xff]
    %vm22 = vcmask 261120
    %v24 = vsel %vm22, %v12, 0
    %26 = vmatprep.subr.mxu0 0.0
    %v27 = vand.u32 %v14, 4294901760
    %28 = vmatpush1.msra.mxu0 %v27
    %29 = vmatprep.subr.mxu0 0.0
    %v30 = vand.u32 %v15, 4294901760
    %31 = vmatpush1.msra.mxu0 %v30
    %32 = vmatprep.subr.mxu0 0.0
    %v33 = vand.u32 %v16, 4294901760
    %34 = vmatpush1.msra.mxu0 %v33
    %35 = vmatprep.subr.mxu0 0.0
    %v36 = vand.u32 %v17, 4294901760
    %37 = vmatpush1.msra.mxu0 %v36
    %38 = vmatprep.subr.mxu0 0.0
    %39 = vmatpush1.msra.mxu0 0.0
    %40 = vmatprep.subr.mxu0 0.0
    %41 = vmatpush1.msra.mxu0 0.0
    %42 = vmatprep.subr.mxu0 0.0
    %43 = vmatpush1.msra.mxu0 0.0
    %44 = vmatprep.subr.mxu0 0.0
    %45 = vmatpush1.msra.mxu0 0.0
    %46 = vmatprep.subr.mxu0 0.0
    %47 = vmatpush1.msra.mxu0 0.0
    %48 = vmatprep.subr.mxu0 0.0
    %49 = vmatpush1.msra.mxu0 0.0
    %50 = vmatprep.subr.mxu0 0.0
    %51 = vmatpush1.msra.mxu0 0.0
    %52 = vmatprep.subr.mxu0 0.0
    %53 = vmatpush1.msra.mxu0 0.0
    %54 = vmatprep.subr.mxu0 0.0
    %55 = vmatpush1.msra.mxu0 0.0
    %56 = vmatprep.subr.mxu0 0.0
    %57 = vmatpush1.msra.mxu0 0.0
    %58 = vmatprep.subr.mxu0 0.0
    %59 = vmatpush1.msra.mxu0 0.0
    %60 = vmatprep.subr.mxu0 0.0
    %61 = vmatpush1.msra.mxu0 0.0
    %62 = vmatprep.subr.mxu0 0.0
    %63 = vmatpush1.msra.mxu0 0.0
    %64 = vmatprep.subr.mxu0 0.0
    %65 = vmatpush1.msra.mxu0 0.0
    %66 = vmatprep.subr.mxu0 0.0
    %67 = vmatpush1.msra.mxu0 0.0
    %68 = vmatprep.subr.mxu0 0.0
    %69 = vmatpush1.msra.mxu0 0.0
    %70 = vmatprep.subr.mxu0 0.0
    %71 = vmatpush1.msra.mxu0 0.0
    %72 = vmatprep.subr.mxu0 0.0
    %73 = vmatpush1.msra.mxu0 0.0
    %74 = vmatprep.subr.mxu0 0.0
    %75 = vmatpush1.msra.mxu0 0.0
    %76 = vmatprep.subr.mxu0 0.0
    %77 = vmatpush1.msra.mxu0 0.0
    %78 = vmatprep.subr.mxu0 0.0
    %79 = vmatpush1.msra.mxu0 0.0
    %80 = vmatprep.subr.mxu0 0.0
    %81 = vmatpush1.msra.mxu0 0.0
    %82 = vmatprep.subr.mxu0 0.0
    %83 = vmatpush1.msra.mxu0 0.0
    %84 = vmatprep.subr.mxu0 0.0
    %85 = vmatpush1.msra.mxu0 0.0
    %86 = vmatprep.subr.mxu0 0.0
    %87 = vmatpush1.msra.mxu0 0.0
    %88 = vmatprep.subr.mxu0 0.0
    %89 = vmatpush1.msra.mxu0 0.0
    %90 = vmatprep.subr.mxu0 0.0
    %91 = vmatpush1.msra.mxu0 0.0
    %92 = vmatprep.subr.mxu0 0.0
    %93 = vmatpush1.msra.mxu0 0.0
    %94 = vmatprep.mubr.f32.mxu0 0.0
    %v95 = vand.u32 %v24, 4294901760
    %v96 = vsub.f32 %v24, %v95
    %v97 = vand.u32 %v96, 4294901760
    %v98 = vsub.f32 %v96, %v97
    %v99 = vand.u32 %v98, 4294901760
    %100 = vmatmul.mubr.f32.gmra.mrb[0].mxu0 %v99
    %v101 = vpop.f32.mrb[0].mxu0
    %v102 = vadd.f32 0.0, %v101
    %v103 = vpop.f32.mrb[0].mxu0
    %104 = vdwg.mxu0
    %105 = vmatprep.subr.mxu0 0.0
    %v106 = vand.u32 %v14, 4294901760
    %v107 = vsub.f32 %v14, %v106
    %v108 = vand.u32 %v107, 4294901760
    %v109 = vsub.f32 %v107, %v108
    %v110 = vand.u32 %v109, 4294901760
    %111 = vmatpush1.msra.mxu0 %v110
    %112 = vmatprep.subr.mxu0 0.0
    %v113 = vand.u32 %v15, 4294901760
    %v114 = vsub.f32 %v15, %v113
    %v115 = vand.u32 %v114, 4294901760
    %v116 = vsub.f32 %v114, %v115
    %v117 = vand.u32 %v116, 4294901760
    %118 = vmatpush1.msra.mxu0 %v117
    %119 = vmatprep.subr.mxu0 0.0
    %v120 = vand.u32 %v16, 4294901760
    %v121 = vsub.f32 %v16, %v120
    %v122 = vand.u32 %v121, 4294901760
    %v123 = vsub.f32 %v121, %v122
    %v124 = vand.u32 %v123, 4294901760
    %125 = vmatpush1.msra.mxu0 %v124
    %126 = vmatprep.subr.mxu0 0.0
    %v127 = vand.u32 %v17, 4294901760
    %v128 = vsub.f32 %v17, %v127
    %v129 = vand.u32 %v128, 4294901760
    %v130 = vsub.f32 %v128, %v129
    %v131 = vand.u32 %v130, 4294901760
    %132 = vmatpush1.msra.mxu0 %v131
    %133 = vmatprep.subr.mxu0 0.0
    %134 = vmatpush1.msra.mxu0 0.0
    %135 = vmatprep.subr.mxu0 0.0
    %136 = vmatpush1.msra.mxu0 0.0
    %137 = vmatprep.subr.mxu0 0.0
    %138 = vmatpush1.msra.mxu0 0.0
    %139 = vmatprep.subr.mxu0 0.0
    %140 = vmatpush1.msra.mxu0 0.0
    %141 = vmatprep.subr.mxu0 0.0
    %142 = vmatpush1.msra.mxu0 0.0
    %143 = vmatprep.subr.mxu0 0.0
    %144 = vmatpush1.msra.mxu0 0.0
    %145 = vmatprep.subr.mxu0 0.0
    %146 = vmatpush1.msra.mxu0 0.0
    %147 = vmatprep.subr.mxu0 0.0
    %148 = vmatpush1.msra.mxu0 0.0
    %149 = vmatprep.subr.mxu0 0.0
    %150 = vmatpush1.msra.mxu0 0.0
    %151 = vmatprep.subr.mxu0 0.0
    %152 = vmatpush1.msra.mxu0 0.0
    %153 = vmatprep.subr.mxu0 0.0
    %154 = vmatpush1.msra.mxu0 0.0
    %155 = vmatprep.subr.mxu0 0.0
    %156 = vmatpush1.msra.mxu0 0.0
    %157 = vmatprep.subr.mxu0 0.0
    %158 = vmatpush1.msra.mxu0 0.0
    %159 = vmatprep.subr.mxu0 0.0
    %160 = vmatpush1.msra.mxu0 0.0
    %161 = vmatprep.subr.mxu0 0.0
    %162 = vmatpush1.msra.mxu0 0.0
    %163 = vmatprep.subr.mxu0 0.0
    %164 = vmatpush1.msra.mxu0 0.0
    %165 = vmatprep.subr.mxu0 0.0
    %166 = vmatpush1.msra.mxu0 0.0
    %167 = vmatprep.subr.mxu0 0.0
    %168 = vmatpush1.msra.mxu0 0.0
    %169 = vmatprep.subr.mxu0 0.0
    %170 = vmatpush1.msra.mxu0 0.0
    %171 = vmatprep.subr.mxu0 0.0
    %172 = vmatpush1.msra.mxu0 0.0
    %173 = vmatprep.subr.mxu0 0.0
    %174 = vmatpush1.msra.mxu0 0.0
    %175 = vmatprep.subr.mxu0 0.0
    %176 = vmatpush1.msra.mxu0 0.0
    %177 = vmatprep.subr.mxu0 0.0
    %178 = vmatpush1.msra.mxu0 0.0
    %179 = vmatprep.subr.mxu0 0.0
    %180 = vmatpush1.msra.mxu0 0.0
    %181 = vmatprep.subr.mxu0 0.0
    %182 = vmatpush1.msra.mxu0 0.0
    %183 = vmatprep.subr.mxu0 0.0
    %184 = vmatpush1.msra.mxu0 0.0
    %185 = vmatprep.subr.mxu0 0.0
    %186 = vmatpush1.msra.mxu0 0.0
    %187 = vmatprep.subr.mxu0 0.0
    %188 = vmatpush1.msra.mxu0 0.0
    %189 = vmatprep.mubr.f32.mxu0 0.0
    %v190 = vand.u32 %v24, 4294901760
    %191 = vmatmul.mubr.f32.gmra.mrb[0].mxu0 %v190
    %v192 = vpop.f32.mrb[0].mxu0
    %v193 = vadd.f32 %v102, %v192
    %v194 = vpop.f32.mrb[0].mxu0
    %195 = vdwg.mxu0
    %196 = vmatprep.subr.mxu0 0.0
    %v197 = vand.u32 %v14, 4294901760
    %v198 = vsub.f32 %v14, %v197
    %199 = vmatpush1.msra.mxu0 %v198
    %200 = vmatprep.subr.mxu0 0.0
    %v201 = vand.u32 %v15, 4294901760
    %v202 = vsub.f32 %v15, %v201
    %203 = vmatpush1.msra.mxu0 %v202
    %204 = vmatprep.subr.mxu0 0.0
    %v205 = vand.u32 %v16, 4294901760
    %v206 = vsub.f32 %v16, %v205
    %207 = vmatpush1.msra.mxu0 %v206
    %208 = vmatprep.subr.mxu0 0.0
    %v209 = vand.u32 %v17, 4294901760
    %v210 = vsub.f32 %v17, %v209
    %211 = vmatpush1.msra.mxu0 %v210
    %212 = vmatprep.subr.mxu0 0.0
    %213 = vmatpush1.msra.mxu0 0.0
    %214 = vmatprep.subr.mxu0 0.0
    %215 = vmatpush1.msra.mxu0 0.0
    %216 = vmatprep.subr.mxu0 0.0
    %217 = vmatpush1.msra.mxu0 0.0
    %218 = vmatprep.subr.mxu0 0.0
    %219 = vmatpush1.msra.mxu0 0.0
    %220 = vmatprep.subr.mxu0 0.0
    %221 = vmatpush1.msra.mxu0 0.0
    %222 = vmatprep.subr.mxu0 0.0
    %223 = vmatpush1.msra.mxu0 0.0
    %224 = vmatprep.subr.mxu0 0.0
    %225 = vmatpush1.msra.mxu0 0.0
    %226 = vmatprep.subr.mxu0 0.0
    %227 = vmatpush1.msra.mxu0 0.0
    %228 = vmatprep.subr.mxu0 0.0
    %229 = vmatpush1.msra.mxu0 0.0
    %230 = vmatprep.subr.mxu0 0.0
    %231 = vmatpush1.msra.mxu0 0.0
    %232 = vmatprep.subr.mxu0 0.0
    %233 = vmatpush1.msra.mxu0 0.0
    %234 = vmatprep.subr.mxu0 0.0
    %235 = vmatpush1.msra.mxu0 0.0
    %236 = vmatprep.subr.mxu0 0.0
    %237 = vmatpush1.msra.mxu0 0.0
    %238 = vmatprep.subr.mxu0 0.0
    %239 = vmatpush1.msra.mxu0 0.0
    %240 = vmatprep.subr.mxu0 0.0
    %241 = vmatpush1.msra.mxu0 0.0
    %242 = vmatprep.subr.mxu0 0.0
    %243 = vmatpush1.msra.mxu0 0.0
    %244 = vmatprep.subr.mxu0 0.0
    %245 = vmatpush1.msra.mxu0 0.0
    %246 = vmatprep.subr.mxu0 0.0
    %247 = vmatpush1.msra.mxu0 0.0
    %248 = vmatprep.subr.mxu0 0.0
    %249 = vmatpush1.msra.mxu0 0.0
    %250 = vmatprep.subr.mxu0 0.0
    %251 = vmatpush1.msra.mxu0 0.0
    %252 = vmatprep.subr.mxu0 0.0
    %253 = vmatpush1.msra.mxu0 0.0
    %254 = vmatprep.subr.mxu0 0.0
    %255 = vmatpush1.msra.mxu0 0.0
    %256 = vmatprep.subr.mxu0 0.0
    %257 = vmatpush1.msra.mxu0 0.0
    %258 = vmatprep.subr.mxu0 0.0
    %259 = vmatpush1.msra.mxu0 0.0
    %260 = vmatprep.subr.mxu0 0.0
    %261 = vmatpush1.msra.mxu0 0.0
    %262 = vmatprep.subr.mxu0 0.0
    %263 = vmatpush1.msra.mxu0 0.0
    %264 = vmatprep.subr.mxu0 0.0
    %265 = vmatpush1.msra.mxu0 0.0
    %266 = vmatprep.subr.mxu0 0.0
    %267 = vmatpush1.msra.mxu0 0.0
    %268 = vmatprep.mubr.f32.mxu0 0.0
    %v269 = vand.u32 %v24, 4294901760
    %v270 = vsub.f32 %v24, %v269
    %271 = vmatmul.mubr.f32.gmra.mrb[0].mxu0 %v270
    %v272 = vpop.f32.mrb[0].mxu0
    %v273 = vadd.f32 %v193, %v272
    %v274 = vpop.f32.mrb[0].mxu0
    %275 = vdwg.mxu0
    %276 = vmatprep.subr.mxu0 0.0
    %v277 = vand.u32 %v14, 4294901760
    %278 = vmatpush1.msra.mxu0 %v277
    %279 = vmatprep.subr.mxu0 0.0
    %v280 = vand.u32 %v15, 4294901760
    %281 = vmatpush1.msra.mxu0 %v280
    %282 = vmatprep.subr.mxu0 0.0
    %v283 = vand.u32 %v16, 4294901760
    %284 = vmatpush1.msra.mxu0 %v283
    %285 = vmatprep.subr.mxu0 0.0
    %v286 = vand.u32 %v17, 4294901760
    %287 = vmatpush1.msra.mxu0 %v286
    %288 = vmatprep.subr.mxu0 0.0
    %289 = vmatpush1.msra.mxu0 0.0
    %290 = vmatprep.subr.mxu0 0.0
    %291 = vmatpush1.msra.mxu0 0.0
    %292 = vmatprep.subr.mxu0 0.0
    %293 = vmatpush1.msra.mxu0 0.0
    %294 = vmatprep.subr.mxu0 0.0
    %295 = vmatpush1.msra.mxu0 0.0
    %296 = vmatprep.subr.mxu0 0.0
    %297 = vmatpush1.msra.mxu0 0.0
    %298 = vmatprep.subr.mxu0 0.0
    %299 = vmatpush1.msra.mxu0 0.0
    %300 = vmatprep.subr.mxu0 0.0
    %301 = vmatpush1.msra.mxu0 0.0
    %302 = vmatprep.subr.mxu0 0.0
    %303 = vmatpush1.msra.mxu0 0.0
    %304 = vmatprep.subr.mxu0 0.0
    %305 = vmatpush1.msra.mxu0 0.0
    %306 = vmatprep.subr.mxu0 0.0
    %307 = vmatpush1.msra.mxu0 0.0
    %308 = vmatprep.subr.mxu0 0.0
    %309 = vmatpush1.msra.mxu0 0.0
    %310 = vmatprep.subr.mxu0 0.0
    %311 = vmatpush1.msra.mxu0 0.0
    %312 = vmatprep.subr.mxu0 0.0
    %313 = vmatpush1.msra.mxu0 0.0
    %314 = vmatprep.subr.mxu0 0.0
    %315 = vmatpush1.msra.mxu0 0.0
    %316 = vmatprep.subr.mxu0 0.0
    %317 = vmatpush1.msra.mxu0 0.0
    %318 = vmatprep.subr.mxu0 0.0
    %319 = vmatpush1.msra.mxu0 0.0
    %320 = vmatprep.subr.mxu0 0.0
    %321 = vmatpush1.msra.mxu0 0.0
    %322 = vmatprep.subr.mxu0 0.0
    %323 = vmatpush1.msra.mxu0 0.0
    %324 = vmatprep.subr.mxu0 0.0
    %325 = vmatpush1.msra.mxu0 0.0
    %326 = vmatprep.subr.mxu0 0.0
    %327 = vmatpush1.msra.mxu0 0.0
    %328 = vmatprep.subr.mxu0 0.0
    %329 = vmatpush1.msra.mxu0 0.0
    %330 = vmatprep.subr.mxu0 0.0
    %331 = vmatpush1.msra.mxu0 0.0
    %332 = vmatprep.subr.mxu0 0.0
    %333 = vmatpush1.msra.mxu0 0.0
    %334 = vmatprep.subr.mxu0 0.0
    %335 = vmatpush1.msra.mxu0 0.0
    %336 = vmatprep.subr.mxu0 0.0
    %337 = vmatpush1.msra.mxu0 0.0
    %338 = vmatprep.subr.mxu0 0.0
    %339 = vmatpush1.msra.mxu0 0.0
    %340 = vmatprep.subr.mxu0 0.0
    %341 = vmatpush1.msra.mxu0 0.0
    %342 = vmatprep.subr.mxu0 0.0
    %343 = vmatpush1.msra.mxu0 0.0
    %344 = vmatprep.mubr.f32.mxu0 0.0
    %v345 = vand.u32 %v24, 4294901760
    %v346 = vsub.f32 %v24, %v345
    %v347 = vand.u32 %v346, 4294901760
    %348 = vmatmul.mubr.f32.gmra.mrb[0].mxu0 %v347
    %v349 = vpop.f32.mrb[0].mxu0
    %v350 = vadd.f32 %v273, %v349
    %v351 = vpop.f32.mrb[0].mxu0
    %352 = vdwg.mxu0
    %353 = vmatprep.subr.mxu0 0.0
    %v354 = vand.u32 %v14, 4294901760
    %v355 = vsub.f32 %v14, %v354
    %v356 = vand.u32 %v355, 4294901760
    %357 = vmatpush1.msra.mxu0 %v356
    %358 = vmatprep.subr.mxu0 0.0
    %v359 = vand.u32 %v15, 4294901760
    %v360 = vsub.f32 %v15, %v359
    %v361 = vand.u32 %v360, 4294901760
    %362 = vmatpush1.msra.mxu0 %v361
    %363 = vmatprep.subr.mxu0 0.0
    %v364 = vand.u32 %v16, 4294901760
    %v365 = vsub.f32 %v16, %v364
    %v366 = vand.u32 %v365, 4294901760
    %367 = vmatpush1.msra.mxu0 %v366
    %368 = vmatprep.subr.mxu0 0.0
    %v369 = vand.u32 %v17, 4294901760
    %v370 = vsub.f32 %v17, %v369
    %v371 = vand.u32 %v370, 4294901760
    %372 = vmatpush1.msra.mxu0 %v371
    %373 = vmatprep.subr.mxu0 0.0
    %374 = vmatpush1.msra.mxu0 0.0
    %375 = vmatprep.subr.mxu0 0.0
    %376 = vmatpush1.msra.mxu0 0.0
    %377 = vmatprep.subr.mxu0 0.0
    %378 = vmatpush1.msra.mxu0 0.0
    %379 = vmatprep.subr.mxu0 0.0
    %380 = vmatpush1.msra.mxu0 0.0
    %381 = vmatprep.subr.mxu0 0.0
    %382 = vmatpush1.msra.mxu0 0.0
    %383 = vmatprep.subr.mxu0 0.0
    %384 = vmatpush1.msra.mxu0 0.0
    %385 = vmatprep.subr.mxu0 0.0
    %386 = vmatpush1.msra.mxu0 0.0
    %387 = vmatprep.subr.mxu0 0.0
    %388 = vmatpush1.msra.mxu0 0.0
    %389 = vmatprep.subr.mxu0 0.0
    %390 = vmatpush1.msra.mxu0 0.0
    %391 = vmatprep.subr.mxu0 0.0
    %392 = vmatpush1.msra.mxu0 0.0
    %393 = vmatprep.subr.mxu0 0.0
    %394 = vmatpush1.msra.mxu0 0.0
    %395 = vmatprep.subr.mxu0 0.0
    %396 = vmatpush1.msra.mxu0 0.0
    %397 = vmatprep.subr.mxu0 0.0
    %398 = vmatpush1.msra.mxu0 0.0
    %399 = vmatprep.subr.mxu0 0.0
    %400 = vmatpush1.msra.mxu0 0.0
    %401 = vmatprep.subr.mxu0 0.0
    %402 = vmatpush1.msra.mxu0 0.0
    %403 = vmatprep.subr.mxu0 0.0
    %404 = vmatpush1.msra.mxu0 0.0
    %405 = vmatprep.subr.mxu0 0.0
    %406 = vmatpush1.msra.mxu0 0.0
    %407 = vmatprep.subr.mxu0 0.0
    %408 = vmatpush1.msra.mxu0 0.0
    %409 = vmatprep.subr.mxu0 0.0
    %410 = vmatpush1.msra.mxu0 0.0
    %411 = vmatprep.subr.mxu0 0.0
    %412 = vmatpush1.msra.mxu0 0.0
    %413 = vmatprep.subr.mxu0 0.0
    %414 = vmatpush1.msra.mxu0 0.0
    %415 = vmatprep.subr.mxu0 0.0
    %416 = vmatpush1.msra.mxu0 0.0
    %417 = vmatprep.subr.mxu0 0.0
    %418 = vmatpush1.msra.mxu0 0.0
    %419 = vmatprep.subr.mxu0 0.0
    %420 = vmatpush1.msra.mxu0 0.0
    %421 = vmatprep.subr.mxu0 0.0
    %422 = vmatpush1.msra.mxu0 0.0
    %423 = vmatprep.subr.mxu0 0.0
    %424 = vmatpush1.msra.mxu0 0.0
    %425 = vmatprep.subr.mxu0 0.0
    %426 = vmatpush1.msra.mxu0 0.0
    %427 = vmatprep.subr.mxu0 0.0
    %428 = vmatpush1.msra.mxu0 0.0
    %429 = vmatprep.mubr.f32.mxu0 0.0
    %v430 = vand.u32 %v24, 4294901760
    %431 = vmatmul.mubr.f32.gmra.mrb[0].mxu0 %v430
    %v432 = vpop.f32.mrb[0].mxu0
    %v433 = vadd.f32 %v350, %v432
    %v434 = vpop.f32.mrb[0].mxu0
    %435 = vdwg.mxu0
    %436 = vmatprep.subr.mxu0 0.0
    %v437 = vand.u32 %v14, 4294901760
    %438 = vmatpush1.msra.mxu0 %v437
    %439 = vmatprep.subr.mxu0 0.0
    %v440 = vand.u32 %v15, 4294901760
    %441 = vmatpush1.msra.mxu0 %v440
    %442 = vmatprep.subr.mxu0 0.0
    %v443 = vand.u32 %v16, 4294901760
    %444 = vmatpush1.msra.mxu0 %v443
    %445 = vmatprep.subr.mxu0 0.0
    %v446 = vand.u32 %v17, 4294901760
    %447 = vmatpush1.msra.mxu0 %v446
    %448 = vmatprep.subr.mxu0 0.0
    %449 = vmatpush1.msra.mxu0 0.0
    %450 = vmatprep.subr.mxu0 0.0
    %451 = vmatpush1.msra.mxu0 0.0
    %452 = vmatprep.subr.mxu0 0.0
    %453 = vmatpush1.msra.mxu0 0.0
    %454 = vmatprep.subr.mxu0 0.0
    %455 = vmatpush1.msra.mxu0 0.0
    %456 = vmatprep.subr.mxu0 0.0
    %457 = vmatpush1.msra.mxu0 0.0
    %458 = vmatprep.subr.mxu0 0.0
    %459 = vmatpush1.msra.mxu0 0.0
    %460 = vmatprep.subr.mxu0 0.0
    %461 = vmatpush1.msra.mxu0 0.0
    %462 = vmatprep.subr.mxu0 0.0
    %463 = vmatpush1.msra.mxu0 0.0
    %464 = vmatprep.subr.mxu0 0.0
    %465 = vmatpush1.msra.mxu0 0.0
    %466 = vmatprep.subr.mxu0 0.0
    %467 = vmatpush1.msra.mxu0 0.0
    %468 = vmatprep.subr.mxu0 0.0
    %469 = vmatpush1.msra.mxu0 0.0
    %470 = vmatprep.subr.mxu0 0.0
    %471 = vmatpush1.msra.mxu0 0.0
    %472 = vmatprep.subr.mxu0 0.0
    %473 = vmatpush1.msra.mxu0 0.0
    %474 = vmatprep.subr.mxu0 0.0
    %475 = vmatpush1.msra.mxu0 0.0
    %476 = vmatprep.subr.mxu0 0.0
    %477 = vmatpush1.msra.mxu0 0.0
    %478 = vmatprep.subr.mxu0 0.0
    %479 = vmatpush1.msra.mxu0 0.0
    %480 = vmatprep.subr.mxu0 0.0
    %481 = vmatpush1.msra.mxu0 0.0
    %482 = vmatprep.subr.mxu0 0.0
    %483 = vmatpush1.msra.mxu0 0.0
    %484 = vmatprep.subr.mxu0 0.0
    %485 = vmatpush1.msra.mxu0 0.0
    %486 = vmatprep.subr.mxu0 0.0
    %487 = vmatpush1.msra.mxu0 0.0
    %488 = vmatprep.subr.mxu0 0.0
    %489 = vmatpush1.msra.mxu0 0.0
    %490 = vmatprep.subr.mxu0 0.0
    %491 = vmatpush1.msra.mxu0 0.0
    %492 = vmatprep.subr.mxu0 0.0
    %493 = vmatpush1.msra.mxu0 0.0
    %494 = vmatprep.subr.mxu0 0.0
    %495 = vmatpush1.msra.mxu0 0.0
    %496 = vmatprep.subr.mxu0 0.0
    %497 = vmatpush1.msra.mxu0 0.0
    %498 = vmatprep.subr.mxu0 0.0
    %499 = vmatpush1.msra.mxu0 0.0
    %500 = vmatprep.subr.mxu0 0.0
    %501 = vmatpush1.msra.mxu0 0.0
    %502 = vmatprep.subr.mxu0 0.0
    %503 = vmatpush1.msra.mxu0 0.0
    %504 = vmatprep.mubr.f32.mxu0 0.0
    %v505 = vand.u32 %v24, 4294901760
    %506 = vmatmul.mubr.f32.gmra.mrb[0].mxu0 %v505
    %v507 = vpop.f32.mrb[0].mxu0
    %v508 = vadd.f32 %v433, %v507
    %v509 = vpop.f32.mrb[0].mxu0
    %510 = vdwg.mxu0
    %v512 = vsel %vm22, %v13, 0
    %514 = vmatprep.subr.mxu0 0.0
    %v515 = vand.u32 %v18, 4294901760
    %516 = vmatpush1.msra.mxu0 %v515
    %517 = vmatprep.subr.mxu0 0.0
    %v518 = vand.u32 %v19, 4294901760
    %519 = vmatpush1.msra.mxu0 %v518
    %520 = vmatprep.subr.mxu0 0.0
    %v521 = vand.u32 %v20, 4294901760
    %522 = vmatpush1.msra.mxu0 %v521
    %523 = vmatprep.subr.mxu0 0.0
    %v524 = vand.u32 %v21, 4294901760
    %525 = vmatpush1.msra.mxu0 %v524
    %526 = vmatprep.subr.mxu0 0.0
    %527 = vmatpush1.msra.mxu0 0.0
    %528 = vmatprep.subr.mxu0 0.0
    %529 = vmatpush1.msra.mxu0 0.0
    %530 = vmatprep.subr.mxu0 0.0
    %531 = vmatpush1.msra.mxu0 0.0
    %532 = vmatprep.subr.mxu0 0.0
    %533 = vmatpush1.msra.mxu0 0.0
    %534 = vmatprep.subr.mxu0 0.0
    %535 = vmatpush1.msra.mxu0 0.0
    %536 = vmatprep.subr.mxu0 0.0
    %537 = vmatpush1.msra.mxu0 0.0
    %538 = vmatprep.subr.mxu0 0.0
    %539 = vmatpush1.msra.mxu0 0.0
    %540 = vmatprep.subr.mxu0 0.0
    %541 = vmatpush1.msra.mxu0 0.0
    %542 = vmatprep.subr.mxu0 0.0
    %543 = vmatpush1.msra.mxu0 0.0
    %544 = vmatprep.subr.mxu0 0.0
    %545 = vmatpush1.msra.mxu0 0.0
    %546 = vmatprep.subr.mxu0 0.0
    %547 = vmatpush1.msra.mxu0 0.0
    %548 = vmatprep.subr.mxu0 0.0
    %549 = vmatpush1.msra.mxu0 0.0
    %550 = vmatprep.subr.mxu0 0.0
    %551 = vmatpush1.msra.mxu0 0.0
    %552 = vmatprep.subr.mxu0 0.0
    %553 = vmatpush1.msra.mxu0 0.0
    %554 = vmatprep.subr.mxu0 0.0
    %555 = vmatpush1.msra.mxu0 0.0
    %556 = vmatprep.subr.mxu0 0.0
    %557 = vmatpush1.msra.mxu0 0.0
    %558 = vmatprep.subr.mxu0 0.0
    %559 = vmatpush1.msra.mxu0 0.0
    %560 = vmatprep.subr.mxu0 0.0
    %561 = vmatpush1.msra.mxu0 0.0
    %562 = vmatprep.subr.mxu0 0.0
    %563 = vmatpush1.msra.mxu0 0.0
    %564 = vmatprep.subr.mxu0 0.0
    %565 = vmatpush1.msra.mxu0 0.0
    %566 = vmatprep.subr.mxu0 0.0
    %567 = vmatpush1.msra.mxu0 0.0
    %568 = vmatprep.subr.mxu0 0.0
    %569 = vmatpush1.msra.mxu0 0.0
    %570 = vmatprep.subr.mxu0 0.0
    %571 = vmatpush1.msra.mxu0 0.0
    %572 = vmatprep.subr.mxu0 0.0
    %573 = vmatpush1.msra.mxu0 0.0
    %574 = vmatprep.subr.mxu0 0.0
    %575 = vmatpush1.msra.mxu0 0.0
    %576 = vmatprep.subr.mxu0 0.0
    %577 = vmatpush1.msra.mxu0 0.0
    %578 = vmatprep.subr.mxu0 0.0
    %579 = vmatpush1.msra.mxu0 0.0
    %580 = vmatprep.subr.mxu0 0.0
    %581 = vmatpush1.msra.mxu0 0.0
    %582 = vmatprep.mubr.f32.mxu0 0.0
    %v583 = vand.u32 %v512, 4294901760
    %v584 = vsub.f32 %v512, %v583
    %v585 = vand.u32 %v584, 4294901760
    %v586 = vsub.f32 %v584, %v585
    %v587 = vand.u32 %v586, 4294901760
    %588 = vmatmul.mubr.f32.gmra.mrb[0].mxu0 %v587
    %v589 = vpop.f32.mrb[0].mxu0
    %v590 = vadd.f32 0.0, %v589
    %v591 = vpop.f32.mrb[0].mxu0
    %592 = vdwg.mxu0
    %593 = vmatprep.subr.mxu0 0.0
    %v594 = vand.u32 %v18, 4294901760
    %v595 = vsub.f32 %v18, %v594
    %v596 = vand.u32 %v595, 4294901760
    %v597 = vsub.f32 %v595, %v596
    %v598 = vand.u32 %v597, 4294901760
    %599 = vmatpush1.msra.mxu0 %v598
    %600 = vmatprep.subr.mxu0 0.0
    %v601 = vand.u32 %v19, 4294901760
    %v602 = vsub.f32 %v19, %v601
    %v603 = vand.u32 %v602, 4294901760
    %v604 = vsub.f32 %v602, %v603
    %v605 = vand.u32 %v604, 4294901760
    %606 = vmatpush1.msra.mxu0 %v605
    %607 = vmatprep.subr.mxu0 0.0
    %v608 = vand.u32 %v20, 4294901760
    %v609 = vsub.f32 %v20, %v608
    %v610 = vand.u32 %v609, 4294901760
    %v611 = vsub.f32 %v609, %v610
    %v612 = vand.u32 %v611, 4294901760
    %613 = vmatpush1.msra.mxu0 %v612
    %614 = vmatprep.subr.mxu0 0.0
    %v615 = vand.u32 %v21, 4294901760
    %v616 = vsub.f32 %v21, %v615
    %v617 = vand.u32 %v616, 4294901760
    %v618 = vsub.f32 %v616, %v617
    %v619 = vand.u32 %v618, 4294901760
    %620 = vmatpush1.msra.mxu0 %v619
    %621 = vmatprep.subr.mxu0 0.0
    %622 = vmatpush1.msra.mxu0 0.0
    %623 = vmatprep.subr.mxu0 0.0
    %624 = vmatpush1.msra.mxu0 0.0
    %625 = vmatprep.subr.mxu0 0.0
    %626 = vmatpush1.msra.mxu0 0.0
    %627 = vmatprep.subr.mxu0 0.0
    %628 = vmatpush1.msra.mxu0 0.0
    %629 = vmatprep.subr.mxu0 0.0
    %630 = vmatpush1.msra.mxu0 0.0
    %631 = vmatprep.subr.mxu0 0.0
    %632 = vmatpush1.msra.mxu0 0.0
    %633 = vmatprep.subr.mxu0 0.0
    %634 = vmatpush1.msra.mxu0 0.0
    %635 = vmatprep.subr.mxu0 0.0
    %636 = vmatpush1.msra.mxu0 0.0
    %637 = vmatprep.subr.mxu0 0.0
    %638 = vmatpush1.msra.mxu0 0.0
    %639 = vmatprep.subr.mxu0 0.0
    %640 = vmatpush1.msra.mxu0 0.0
    %641 = vmatprep.subr.mxu0 0.0
    %642 = vmatpush1.msra.mxu0 0.0
    %643 = vmatprep.subr.mxu0 0.0
    %644 = vmatpush1.msra.mxu0 0.0
    %645 = vmatprep.subr.mxu0 0.0
    %646 = vmatpush1.msra.mxu0 0.0
    %647 = vmatprep.subr.mxu0 0.0
    %648 = vmatpush1.msra.mxu0 0.0
    %649 = vmatprep.subr.mxu0 0.0
    %650 = vmatpush1.msra.mxu0 0.0
    %651 = vmatprep.subr.mxu0 0.0
    %652 = vmatpush1.msra.mxu0 0.0
    %653 = vmatprep.subr.mxu0 0.0
    %654 = vmatpush1.msra.mxu0 0.0
    %655 = vmatprep.subr.mxu0 0.0
    %656 = vmatpush1.msra.mxu0 0.0
    %657 = vmatprep.subr.mxu0 0.0
    %658 = vmatpush1.msra.mxu0 0.0
    %659 = vmatprep.subr.mxu0 0.0
    %660 = vmatpush1.msra.mxu0 0.0
    %661 = vmatprep.subr.mxu0 0.0
    %662 = vmatpush1.msra.mxu0 0.0
    %663 = vmatprep.subr.mxu0 0.0
    %664 = vmatpush1.msra.mxu0 0.0
    %665 = vmatprep.subr.mxu0 0.0
    %666 = vmatpush1.msra.mxu0 0.0
    %667 = vmatprep.subr.mxu0 0.0
    %668 = vmatpush1.msra.mxu0 0.0
    %669 = vmatprep.subr.mxu0 0.0
    %670 = vmatpush1.msra.mxu0 0.0
    %671 = vmatprep.subr.mxu0 0.0
    %672 = vmatpush1.msra.mxu0 0.0
    %673 = vmatprep.subr.mxu0 0.0
    %674 = vmatpush1.msra.mxu0 0.0
    %675 = vmatprep.subr.mxu0 0.0
    %676 = vmatpush1.msra.mxu0 0.0
    %677 = vmatprep.mubr.f32.mxu0 0.0
    %v678 = vand.u32 %v512, 4294901760
    %679 = vmatmul.mubr.f32.gmra.mrb[0].mxu0 %v678
    %v680 = vpop.f32.mrb[0].mxu0
    %v681 = vadd.f32 %v590, %v680
    %v682 = vpop.f32.mrb[0].mxu0
    %683 = vdwg.mxu0
    %684 = vmatprep.subr.mxu0 0.0
    %v685 = vand.u32 %v18, 4294901760
    %v686 = vsub.f32 %v18, %v685
    %687 = vmatpush1.msra.mxu0 %v686
    %688 = vmatprep.subr.mxu0 0.0
    %v689 = vand.u32 %v19, 4294901760
    %v690 = vsub.f32 %v19, %v689
    %691 = vmatpush1.msra.mxu0 %v690
    %692 = vmatprep.subr.mxu0 0.0
    %v693 = vand.u32 %v20, 4294901760
    %v694 = vsub.f32 %v20, %v693
    %695 = vmatpush1.msra.mxu0 %v694
    %696 = vmatprep.subr.mxu0 0.0
    %v697 = vand.u32 %v21, 4294901760
    %v698 = vsub.f32 %v21, %v697
    %699 = vmatpush1.msra.mxu0 %v698
    %700 = vmatprep.subr.mxu0 0.0
    %701 = vmatpush1.msra.mxu0 0.0
    %702 = vmatprep.subr.mxu0 0.0
    %703 = vmatpush1.msra.mxu0 0.0
    %704 = vmatprep.subr.mxu0 0.0
    %705 = vmatpush1.msra.mxu0 0.0
    %706 = vmatprep.subr.mxu0 0.0
    %707 = vmatpush1.msra.mxu0 0.0
    %708 = vmatprep.subr.mxu0 0.0
    %709 = vmatpush1.msra.mxu0 0.0
    %710 = vmatprep.subr.mxu0 0.0
    %711 = vmatpush1.msra.mxu0 0.0
    %712 = vmatprep.subr.mxu0 0.0
    %713 = vmatpush1.msra.mxu0 0.0
    %714 = vmatprep.subr.mxu0 0.0
    %715 = vmatpush1.msra.mxu0 0.0
    %716 = vmatprep.subr.mxu0 0.0
    %717 = vmatpush1.msra.mxu0 0.0
    %718 = vmatprep.subr.mxu0 0.0
    %719 = vmatpush1.msra.mxu0 0.0
    %720 = vmatprep.subr.mxu0 0.0
    %721 = vmatpush1.msra.mxu0 0.0
    %722 = vmatprep.subr.mxu0 0.0
    %723 = vmatpush1.msra.mxu0 0.0
    %724 = vmatprep.subr.mxu0 0.0
    %725 = vmatpush1.msra.mxu0 0.0
    %726 = vmatprep.subr.mxu0 0.0
    %727 = vmatpush1.msra.mxu0 0.0
    %728 = vmatprep.subr.mxu0 0.0
    %729 = vmatpush1.msra.mxu0 0.0
    %730 = vmatprep.subr.mxu0 0.0
    %731 = vmatpush1.msra.mxu0 0.0
    %732 = vmatprep.subr.mxu0 0.0
    %733 = vmatpush1.msra.mxu0 0.0
    %734 = vmatprep.subr.mxu0 0.0
    %735 = vmatpush1.msra.mxu0 0.0
    %736 = vmatprep.subr.mxu0 0.0
    %737 = vmatpush1.msra.mxu0 0.0
    %738 = vmatprep.subr.mxu0 0.0
    %739 = vmatpush1.msra.mxu0 0.0
    %740 = vmatprep.subr.mxu0 0.0
    %741 = vmatpush1.msra.mxu0 0.0
    %742 = vmatprep.subr.mxu0 0.0
    %743 = vmatpush1.msra.mxu0 0.0
    %744 = vmatprep.subr.mxu0 0.0
    %745 = vmatpush1.msra.mxu0 0.0
    %746 = vmatprep.subr.mxu0 0.0
    %747 = vmatpush1.msra.mxu0 0.0
    %748 = vmatprep.subr.mxu0 0.0
    %749 = vmatpush1.msra.mxu0 0.0
    %750 = vmatprep.subr.mxu0 0.0
    %751 = vmatpush1.msra.mxu0 0.0
    %752 = vmatprep.subr.mxu0 0.0
    %753 = vmatpush1.msra.mxu0 0.0
    %754 = vmatprep.subr.mxu0 0.0
    %755 = vmatpush1.msra.mxu0 0.0
    %756 = vmatprep.mubr.f32.mxu0 0.0
    %v757 = vand.u32 %v512, 4294901760
    %v758 = vsub.f32 %v512, %v757
    %759 = vmatmul.mubr.f32.gmra.mrb[0].mxu0 %v758
    %v760 = vpop.f32.mrb[0].mxu0
    %v761 = vadd.f32 %v681, %v760
    %v762 = vpop.f32.mrb[0].mxu0
    %763 = vdwg.mxu0
    %764 = vmatprep.subr.mxu0 0.0
    %v765 = vand.u32 %v18, 4294901760
    %766 = vmatpush1.msra.mxu0 %v765
    %767 = vmatprep.subr.mxu0 0.0
    %v768 = vand.u32 %v19, 4294901760
    %769 = vmatpush1.msra.mxu0 %v768
    %770 = vmatprep.subr.mxu0 0.0
    %v771 = vand.u32 %v20, 4294901760
    %772 = vmatpush1.msra.mxu0 %v771
    %773 = vmatprep.subr.mxu0 0.0
    %v774 = vand.u32 %v21, 4294901760
    %775 = vmatpush1.msra.mxu0 %v774
    %776 = vmatprep.subr.mxu0 0.0
    %777 = vmatpush1.msra.mxu0 0.0
    %778 = vmatprep.subr.mxu0 0.0
    %779 = vmatpush1.msra.mxu0 0.0
    %780 = vmatprep.subr.mxu0 0.0
    %781 = vmatpush1.msra.mxu0 0.0
    %782 = vmatprep.subr.mxu0 0.0
    %783 = vmatpush1.msra.mxu0 0.0
    %784 = vmatprep.subr.mxu0 0.0
    %785 = vmatpush1.msra.mxu0 0.0
    %786 = vmatprep.subr.mxu0 0.0
    %787 = vmatpush1.msra.mxu0 0.0
    %788 = vmatprep.subr.mxu0 0.0
    %789 = vmatpush1.msra.mxu0 0.0
    %790 = vmatprep.subr.mxu0 0.0
    %791 = vmatpush1.msra.mxu0 0.0
    %792 = vmatprep.subr.mxu0 0.0
    %793 = vmatpush1.msra.mxu0 0.0
    %794 = vmatprep.subr.mxu0 0.0
    %795 = vmatpush1.msra.mxu0 0.0
    %796 = vmatprep.subr.mxu0 0.0
    %797 = vmatpush1.msra.mxu0 0.0
    %798 = vmatprep.subr.mxu0 0.0
    %799 = vmatpush1.msra.mxu0 0.0
    %800 = vmatprep.subr.mxu0 0.0
    %801 = vmatpush1.msra.mxu0 0.0
    %802 = vmatprep.subr.mxu0 0.0
    %803 = vmatpush1.msra.mxu0 0.0
    %804 = vmatprep.subr.mxu0 0.0
    %805 = vmatpush1.msra.mxu0 0.0
    %806 = vmatprep.subr.mxu0 0.0
    %807 = vmatpush1.msra.mxu0 0.0
    %808 = vmatprep.subr.mxu0 0.0
    %809 = vmatpush1.msra.mxu0 0.0
    %810 = vmatprep.subr.mxu0 0.0
    %811 = vmatpush1.msra.mxu0 0.0
    %812 = vmatprep.subr.mxu0 0.0
    %813 = vmatpush1.msra.mxu0 0.0
    %814 = vmatprep.subr.mxu0 0.0
    %815 = vmatpush1.msra.mxu0 0.0
    %816 = vmatprep.subr.mxu0 0.0
    %817 = vmatpush1.msra.mxu0 0.0
    %818 = vmatprep.subr.mxu0 0.0
    %819 = vmatpush1.msra.mxu0 0.0
    %820 = vmatprep.subr.mxu0 0.0
    %821 = vmatpush1.msra.mxu0 0.0
    %822 = vmatprep.subr.mxu0 0.0
    %823 = vmatpush1.msra.mxu0 0.0
    %824 = vmatprep.subr.mxu0 0.0
    %825 = vmatpush1.msra.mxu0 0.0
    %826 = vmatprep.subr.mxu0 0.0
    %827 = vmatpush1.msra.mxu0 0.0
    %828 = vmatprep.subr.mxu0 0.0
    %829 = vmatpush1.msra.mxu0 0.0
    %830 = vmatprep.subr.mxu0 0.0
    %831 = vmatpush1.msra.mxu0 0.0
    %832 = vmatprep.mubr.f32.mxu0 0.0
    %v833 = vand.u32 %v512, 4294901760
    %v834 = vsub.f32 %v512, %v833
    %v835 = vand.u32 %v834, 4294901760
    %836 = vmatmul.mubr.f32.gmra.mrb[0].mxu0 %v835
    %v837 = vpop.f32.mrb[0].mxu0
    %v838 = vadd.f32 %v761, %v837
    %v839 = vpop.f32.mrb[0].mxu0
    %840 = vdwg.mxu0
    %841 = vmatprep.subr.mxu0 0.0
    %v842 = vand.u32 %v18, 4294901760
    %v843 = vsub.f32 %v18, %v842
    %v844 = vand.u32 %v843, 4294901760
    %845 = vmatpush1.msra.mxu0 %v844
    %846 = vmatprep.subr.mxu0 0.0
    %v847 = vand.u32 %v19, 4294901760
    %v848 = vsub.f32 %v19, %v847
    %v849 = vand.u32 %v848, 4294901760
    %850 = vmatpush1.msra.mxu0 %v849
    %851 = vmatprep.subr.mxu0 0.0
    %v852 = vand.u32 %v20, 4294901760
    %v853 = vsub.f32 %v20, %v852
    %v854 = vand.u32 %v853, 4294901760
    %855 = vmatpush1.msra.mxu0 %v854
    %856 = vmatprep.subr.mxu0 0.0
    %v857 = vand.u32 %v21, 4294901760
    %v858 = vsub.f32 %v21, %v857
    %v859 = vand.u32 %v858, 4294901760
    %860 = vmatpush1.msra.mxu0 %v859
    %861 = vmatprep.subr.mxu0 0.0
    %862 = vmatpush1.msra.mxu0 0.0
    %863 = vmatprep.subr.mxu0 0.0
    %864 = vmatpush1.msra.mxu0 0.0
    %865 = vmatprep.subr.mxu0 0.0
    %866 = vmatpush1.msra.mxu0 0.0
    %867 = vmatprep.subr.mxu0 0.0
    %868 = vmatpush1.msra.mxu0 0.0
    %869 = vmatprep.subr.mxu0 0.0
    %870 = vmatpush1.msra.mxu0 0.0
    %871 = vmatprep.subr.mxu0 0.0
    %872 = vmatpush1.msra.mxu0 0.0
    %873 = vmatprep.subr.mxu0 0.0
    %874 = vmatpush1.msra.mxu0 0.0
    %875 = vmatprep.subr.mxu0 0.0
    %876 = vmatpush1.msra.mxu0 0.0
    %877 = vmatprep.subr.mxu0 0.0
    %878 = vmatpush1.msra.mxu0 0.0
    %879 = vmatprep.subr.mxu0 0.0
    %880 = vmatpush1.msra.mxu0 0.0
    %881 = vmatprep.subr.mxu0 0.0
    %882 = vmatpush1.msra.mxu0 0.0
    %883 = vmatprep.subr.mxu0 0.0
    %884 = vmatpush1.msra.mxu0 0.0
    %885 = vmatprep.subr.mxu0 0.0
    %886 = vmatpush1.msra.mxu0 0.0
    %887 = vmatprep.subr.mxu0 0.0
    %888 = vmatpush1.msra.mxu0 0.0
    %889 = vmatprep.subr.mxu0 0.0
    %890 = vmatpush1.msra.mxu0 0.0
    %891 = vmatprep.subr.mxu0 0.0
    %892 = vmatpush1.msra.mxu0 0.0
    %893 = vmatprep.subr.mxu0 0.0
    %894 = vmatpush1.msra.mxu0 0.0
    %895 = vmatprep.subr.mxu0 0.0
    %896 = vmatpush1.msra.mxu0 0.0
    %897 = vmatprep.subr.mxu0 0.0
    %898 = vmatpush1.msra.mxu0 0.0
    %899 = vmatprep.subr.mxu0 0.0
    %900 = vmatpush1.msra.mxu0 0.0
    %901 = vmatprep.subr.mxu0 0.0
    %902 = vmatpush1.msra.mxu0 0.0
    %903 = vmatprep.subr.mxu0 0.0
    %904 = vmatpush1.msra.mxu0 0.0
    %905 = vmatprep.subr.mxu0 0.0
    %906 = vmatpush1.msra.mxu0 0.0
    %907 = vmatprep.subr.mxu0 0.0
    %908 = vmatpush1.msra.mxu0 0.0
    %909 = vmatprep.subr.mxu0 0.0
    %910 = vmatpush1.msra.mxu0 0.0
    %911 = vmatprep.subr.mxu0 0.0
    %912 = vmatpush1.msra.mxu0 0.0
    %913 = vmatprep.subr.mxu0 0.0
    %914 = vmatpush1.msra.mxu0 0.0
    %915 = vmatprep.subr.mxu0 0.0
    %916 = vmatpush1.msra.mxu0 0.0
    %917 = vmatprep.mubr.f32.mxu0 0.0
    %v918 = vand.u32 %v512, 4294901760
    %919 = vmatmul.mubr.f32.gmra.mrb[0].mxu0 %v918
    %v920 = vpop.f32.mrb[0].mxu0
    %v921 = vadd.f32 %v838, %v920
    %v922 = vpop.f32.mrb[0].mxu0
    %923 = vdwg.mxu0
    %924 = vmatprep.subr.mxu0 0.0
    %v925 = vand.u32 %v18, 4294901760
    %926 = vmatpush1.msra.mxu0 %v925
    %927 = vmatprep.subr.mxu0 0.0
    %v928 = vand.u32 %v19, 4294901760
    %929 = vmatpush1.msra.mxu0 %v928
    %930 = vmatprep.subr.mxu0 0.0
    %v931 = vand.u32 %v20, 4294901760
    %932 = vmatpush1.msra.mxu0 %v931
    %933 = vmatprep.subr.mxu0 0.0
    %v934 = vand.u32 %v21, 4294901760
    %935 = vmatpush1.msra.mxu0 %v934
    %936 = vmatprep.subr.mxu0 0.0
    %937 = vmatpush1.msra.mxu0 0.0
    %938 = vmatprep.subr.mxu0 0.0
    %939 = vmatpush1.msra.mxu0 0.0
    %940 = vmatprep.subr.mxu0 0.0
    %941 = vmatpush1.msra.mxu0 0.0
    %942 = vmatprep.subr.mxu0 0.0
    %943 = vmatpush1.msra.mxu0 0.0
    %944 = vmatprep.subr.mxu0 0.0
    %945 = vmatpush1.msra.mxu0 0.0
    %946 = vmatprep.subr.mxu0 0.0
    %947 = vmatpush1.msra.mxu0 0.0
    %948 = vmatprep.subr.mxu0 0.0
    %949 = vmatpush1.msra.mxu0 0.0
    %950 = vmatprep.subr.mxu0 0.0
    %951 = vmatpush1.msra.mxu0 0.0
    %952 = vmatprep.subr.mxu0 0.0
    %953 = vmatpush1.msra.mxu0 0.0
    %954 = vmatprep.subr.mxu0 0.0
    %955 = vmatpush1.msra.mxu0 0.0
    %956 = vmatprep.subr.mxu0 0.0
    %957 = vmatpush1.msra.mxu0 0.0
    %958 = vmatprep.subr.mxu0 0.0
    %959 = vmatpush1.msra.mxu0 0.0
    %960 = vmatprep.subr.mxu0 0.0
    %961 = vmatpush1.msra.mxu0 0.0
    %962 = vmatprep.subr.mxu0 0.0
    %963 = vmatpush1.msra.mxu0 0.0
    %964 = vmatprep.subr.mxu0 0.0
    %965 = vmatpush1.msra.mxu0 0.0
    %966 = vmatprep.subr.mxu0 0.0
    %967 = vmatpush1.msra.mxu0 0.0
    %968 = vmatprep.subr.mxu0 0.0
    %969 = vmatpush1.msra.mxu0 0.0
    %970 = vmatprep.subr.mxu0 0.0
    %971 = vmatpush1.msra.mxu0 0.0
    %972 = vmatprep.subr.mxu0 0.0
    %973 = vmatpush1.msra.mxu0 0.0
    %974 = vmatprep.subr.mxu0 0.0
    %975 = vmatpush1.msra.mxu0 0.0
    %976 = vmatprep.subr.mxu0 0.0
    %977 = vmatpush1.msra.mxu0 0.0
    %978 = vmatprep.subr.mxu0 0.0
    %979 = vmatpush1.msra.mxu0 0.0
    %980 = vmatprep.subr.mxu0 0.0
    %981 = vmatpush1.msra.mxu0 0.0
    %982 = vmatprep.subr.mxu0 0.0
    %983 = vmatpush1.msra.mxu0 0.0
    %984 = vmatprep.subr.mxu0 0.0
    %985 = vmatpush1.msra.mxu0 0.0
    %986 = vmatprep.subr.mxu0 0.0
    %987 = vmatpush1.msra.mxu0 0.0
    %988 = vmatprep.subr.mxu0 0.0
    %989 = vmatpush1.msra.mxu0 0.0
    %990 = vmatprep.subr.mxu0 0.0
    %991 = vmatpush1.msra.mxu0 0.0
    %992 = vmatprep.mubr.f32.mxu0 0.0
    %v993 = vand.u32 %v512, 4294901760
    %994 = vmatmul.mubr.f32.gmra.mrb[0].mxu0 %v993
    %v995 = vpop.f32.mrb[0].mxu0
    %v996 = vadd.f32 %v921, %v995
    %v997 = vpop.f32.mrb[0].mxu0
    %998 = vdwg.mxu0
    %vm999 = vcmask 130048
    %1000 = vst.msk [vmem:[#allocation2] sm:$0xff] %vm999, %v508
    %1001 = vst.msk [vmem:[#allocation2 + $0x8] sm:$0xff] %vm999, %v996
    // Predicated region
    $region10: #{tpu_custom_call.1} parent=1 // pred_check
      _
    $region11: #{tpu_custom_call.1} parent=1 // pred_check_branch
      %1003 = sbr.rel (0) target = $region13
    $region12: #{tpu_custom_call.1} parent=1 // pred_region
      %s1005 = ssub.s32 256, 256
      %1006 = vsyncadd [#allocation3], %s1005
      %s1007 = sshll.u32 [#allocation2], 4
      %s1008 = int_to_ptr.vmem [resolvable:$true] %s1007
      %1013 = dma.vmem_to_hbm [thread:$0]  %s1008, 256, %s2, [#allocation3], 128, 128, 8
    $region13: #{tpu_custom_call.1} parent=1 // pred_fallthru
      _
    // Predicated region
    $region14: #{tpu_custom_call.1} parent=1 // pred_check
      _
    $region15: #{tpu_custom_call.1} parent=1 // pred_check_branch
      %1015 = sbr.rel (0) target = $region17
    $region16: #{tpu_custom_call.1} parent=1 // pred_region
      %1016 = dma.done [#allocation3], 256
    $region17: #{tpu_custom_call.1} parent=1 // pred_fallthru
      _
    %1017 = vsyncpa [#allocation3], 1

</llo_original>
